<compile_context>
chip_gen: v7x
topology: tpu7x:2x2x1
jax: 0.10.0
libtpu: 0.0.40
codegen_flags: <defaults>
</compile_context>

<pallas_src>
import functools

import jax
import jax.numpy as jnp
from jax.experimental import pallas as pl
from jax.experimental.pallas import tpu as pltpu

LANES = 128
TARGET_BLOCK_BYTES = 4 * 1024 * 1024   # ~4 MiB per input per grid step.


def _round_up(x, m):
    return ((x + m - 1) // m) * m


def _l1_partial_sum_kernel(p_ref, g_ref, o_ref, *, steps, tile_rows,
                           last_block, valid_tail_rows, mask_tail):
    c = pl.program_id(0)   # core-split axis ("parallel")
    i = pl.program_id(1)   # reduction axis ("arbitrary")

    @pl.when(i == 0)
    def _():
        o_ref[...] = jnp.zeros_like(o_ref)

    # |p - g| in the input dtype, accumulate in f32.
    d = jnp.abs(p_ref[...] - g_ref[...]).astype(jnp.float32)

    def accumulate(vals):
        # Reduce across row-groups only (pure VPU vreg adds), keeping an
        # (8, 128) lane-partial; the single cross-lane reduce happens once in
        # the wrapper.
        partial = jnp.sum(vals.reshape(tile_rows // 8, 8, LANES), axis=0)
        o_ref[...] += partial[None, :, :]

    if mask_tail:
        # Only the globally-last block is ragged; gate the mask so every other
        # step pays zero extra VALU work.
        is_last = (c * steps + i) == last_block

        @pl.when(is_last)
        def _():
            row = jax.lax.broadcasted_iota(jnp.int32, (tile_rows, 1), 0)
            # Keep this a select (NOT multiply-by-mask): rows past the end of
            # the array hold undefined bits that may be NaN/Inf.
            accumulate(jnp.where(row < valid_tail_rows, d, 0.0))

        @pl.when(jnp.logical_not(is_last))
        def _():
            accumulate(d)
    else:
        accumulate(d)


@jax.jit
def l1_loss(prediction, gt):
    """mean(|prediction - gt|); bulk computed in a Pallas TPU kernel."""
    assert prediction.shape == gt.shape, "prediction/gt shape mismatch"
    total = prediction.size

    dtype = jnp.result_type(prediction.dtype, gt.dtype)
    p = prediction.reshape(-1).astype(dtype)
    g = gt.reshape(-1).astype(dtype)

    if total == 0:
        return jnp.float32(jnp.nan)   # matches torch.mean on an empty tensor

    itemsize = jnp.dtype(dtype).itemsize
    # Sublane packing alignment: 8 rows for 32-bit, 16 for bf16, 32 for 8-bit.
    row_align = max(8, 32 // itemsize)
    full_rows = total // LANES

    if full_rows < row_align:
        # Too small for even one packed tile -- plain JAX is the right tool.
        return jnp.mean(jnp.abs(p.astype(jnp.float32) - g.astype(jnp.float32)))

    # Dtype-scaled tile: target ~TARGET_BLOCK_BYTES per input per grid step.
    target_rows = max(row_align,
                      (TARGET_BLOCK_BYTES // (LANES * itemsize))
                      // row_align * row_align)

    needed = pl.cdiv(full_rows, target_rows)
    if needed >= 2:
        # Split the block range two ways (engages both TensorCores on v7x via
        # the "parallel" leading axis; a harmless serial loop on 1-TC chips).
        # Round the block count up to a multiple of the split and re-derive
        # the tile so nsplit * steps == needed exactly -> no duplicate block.
        nsplit = 2
        needed = nsplit * pl.cdiv(needed, nsplit)
        tile_rows = _round_up(pl.cdiv(full_rows, needed), row_align)
        if (needed - 1) * tile_rows >= full_rows:
            # Pathological only for ~1e9+ elements (alignment padding would
            # leave the last block empty): fall back to a serial 1-way split.
            nsplit = 1
            tile_rows = target_rows
            needed = pl.cdiv(full_rows, tile_rows)
        kernel_rows = full_rows             # ragged last block masked in-kernel
        mask_tail = needed * tile_rows != full_rows
    else:
        # Single block: floor-align so the block never extends past the array;
        # the few leftover rows join the tiny plain-JAX tail below.
        nsplit = 1
        needed = 1
        tile_rows = (full_rows // row_align) * row_align
        kernel_rows = tile_rows
        mask_tail = False
    steps = needed // nsplit
    last_block = needed - 1
    valid_tail_rows = full_rows - last_block * tile_rows

    bulk = kernel_rows * LANES
    # When bulk == total (128-aligned sizes, the common case) this is a free
    # reshape / view; otherwise XLA materializes the bulk once.
    # (allow_input_fusion could fuse that slice into the pallas_call inputs;
    #  left off here to keep the portable path simple.)
    p2 = p[:bulk].reshape(kernel_rows, LANES)
    g2 = g[:bulk].reshape(kernel_rows, LANES)

    kernel = functools.partial(
        _l1_partial_sum_kernel,
        steps=steps, tile_rows=tile_rows, last_block=last_block,
        valid_tail_rows=valid_tail_rows, mask_tail=mask_tail)

    block_bytes = tile_rows * LANES * itemsize
    # 2 inputs x 2 pipeline buffers + headroom; also lifts v5e's 16 MiB default
    # scoped-VMEM limit.  Stays well under every generation's physical VMEM.
    vmem_limit = int(max(32 * 1024 * 1024, 4 * block_bytes + 4 * 1024 * 1024))

    partials = pl.pallas_call(
        kernel,
        out_shape=jax.ShapeDtypeStruct((nsplit, 8, LANES), jnp.float32),
        grid_spec=pltpu.PrefetchScalarGridSpec(
            num_scalar_prefetch=0,
            grid=(nsplit, steps),
            in_specs=[
                pl.BlockSpec((tile_rows, LANES), lambda c, i: (c * steps + i, 0)),
                pl.BlockSpec((tile_rows, LANES), lambda c, i: (c * steps + i, 0)),
            ],
            out_specs=pl.BlockSpec((1, 8, LANES), lambda c, i: (c, 0, 0)),
        ),
        compiler_params=pltpu.CompilerParams(
            dimension_semantics=("parallel", "arbitrary"),
            vmem_limit_bytes=vmem_limit),
        cost_estimate=pl.CostEstimate(
            flops=3 * bulk,
            transcendentals=0,
            bytes_accessed=2 * bulk * itemsize + nsplit * 8 * LANES * 4),
    )(p2, g2)

    total_sum = jnp.sum(partials)   # single cross-lane reduce, once

    if bulk != total:
        # Ragged remainder (< row_align rows + sub-128 elements): negligible,
        # summed in plain JAX.
        tail = jnp.abs(p[bulk:].astype(jnp.float32) -
                       g[bulk:].astype(jnp.float32))
        total_sum = total_sum + jnp.sum(tail)

    return total_sum / jnp.float32(total)


if __name__ == "__main__":
    key = jax.random.PRNGKey(0)

    def check(shape, k):
        k1, k2 = jax.random.split(k)
        pred = jax.random.normal(k1, shape, dtype=jnp.float32)
        gt = jax.random.normal(k2, shape, dtype=jnp.float32)
        loss = l1_loss(pred, gt)
        jax.block_until_ready(loss)
        ref = jnp.mean(jnp.abs(pred - gt))
        assert jnp.allclose(loss, ref, rtol=1e-5, atol=1e-6), (shape, loss, ref)

    k1, k2, k3, k4 = jax.random.split(key, 4)
    check((2, 4, 16, 16), k1)        # aligned: single full block, no masking
    check((3, 5, 17, 19), k2)        # ragged rows + sub-128 tail (JAX tail)
    check((1, 1, 660, 800), k3)      # 128-aligned total, single large block
    check((1, 1, 1200, 1000), k4)    # multi-block 2-way split + ragged last block

    print("KERNEL_OK")
</pallas_src>

<mosaic_0001>
module attributes {stable_mosaic.version = 11 : i64} {
  func.func @_l1_partial_sum_kernel(%arg0: i32, %arg1: i32, %arg2: memref<16x128xf32, #tpu.memory_space<vmem>>, %arg3: memref<16x128xf32, #tpu.memory_space<vmem>>, %arg4: memref<1x8x128xf32, #tpu.memory_space<vmem>>) attributes {dimension_semantics = [#tpu.dimension_semantics<parallel>, #tpu.dimension_semantics<arbitrary>], iteration_bounds = array<i64: 1, 1>, scalar_prefetch = 0 : i64, scratch_operands = 0 : i64, tpu.core_type = #tpu.core_type<tc>, window_params = [{transform_indices = @transform_0, window_bounds = array<i64: 16, 128>}, {transform_indices = @transform_1, window_bounds = array<i64: 16, 128>}, {transform_indices = @transform_2, window_bounds = array<i64: 1, 8, 128>}]} {
    %c0_i32 = arith.constant 0 : i32
    %0 = arith.cmpi eq, %arg1, %c0_i32 : i32
    %1 = arith.extui %0 : i1 to i32
    %c0_i32_0 = arith.constant 0 : i32
    %2 = arith.cmpi ne, %1, %c0_i32_0 : i32
    scf.if %2 {
      %cst_10 = arith.constant 0.000000e+00 : f32
      %13 = vector.broadcast %cst_10 : f32 to vector<1x8x128xf32>
      %c0_11 = arith.constant 0 : index
      %c0_12 = arith.constant 0 : index
      %c0_13 = arith.constant 0 : index
      %14 = vector.load %arg4[%c0_11, %c0_12, %c0_13] : memref<1x8x128xf32, #tpu.memory_space<vmem>>, vector<1x8x128xf32>
      tpu.vector_store %arg4[%c0_11, %c0_12, %c0_13], %13 {strides = array<i32>} : memref<1x8x128xf32, #tpu.memory_space<vmem>>, vector<1x8x128xf32>,
    } else {
    }
    %c0 = arith.constant 0 : index
    %c0_1 = arith.constant 0 : index
    %3 = vector.load %arg2[%c0, %c0_1] : memref<16x128xf32, #tpu.memory_space<vmem>>, vector<16x128xf32>
    %c0_2 = arith.constant 0 : index
    %c0_3 = arith.constant 0 : index
    %4 = vector.load %arg3[%c0_2, %c0_3] : memref<16x128xf32, #tpu.memory_space<vmem>>, vector<16x128xf32>
    %5 = arith.subf %3, %4 : vector<16x128xf32>
    %6 = math.absf %5 : vector<16x128xf32>
    %7 = vector.shape_cast %6 : vector<16x128xf32> to vector<2x8x128xf32>
    %cst = arith.constant dense<0.000000e+00> : vector<8x128xf32>
    %8 = vector.multi_reduction <add>, %7, %cst [0] : vector<2x8x128xf32> to vector<8x128xf32>
    %c0_4 = arith.constant 0 : index
    %c0_5 = arith.constant 0 : index
    %c0_6 = arith.constant 0 : index
    %9 = vector.load %arg4[%c0_4, %c0_5, %c0_6] : memref<1x8x128xf32, #tpu.memory_space<vmem>>, vector<1x8x128xf32>
    %10 = vector.shape_cast %8 : vector<8x128xf32> to vector<1x8x128xf32>
    %11 = arith.addf %9, %10 : vector<1x8x128xf32>
    %c0_7 = arith.constant 0 : index
    %c0_8 = arith.constant 0 : index
    %c0_9 = arith.constant 0 : index
    %12 = vector.load %arg4[%c0_7, %c0_8, %c0_9] : memref<1x8x128xf32, #tpu.memory_space<vmem>>, vector<1x8x128xf32>
    tpu.vector_store %arg4[%c0_7, %c0_8, %c0_9], %11 {strides = array<i32>} : memref<1x8x128xf32, #tpu.memory_space<vmem>>, vector<1x8x128xf32>,
    return
  }
  func.func @transform_0(%arg0: i32, %arg1: i32) -> (i32, i32) {
    %c1_i32 = arith.constant 1 : i32
    %0 = arith.muli %arg0, %c1_i32 : i32
    %1 = arith.addi %0, %arg1 : i32
    %c0_i32 = arith.constant 0 : i32
    %c0_i32_0 = arith.constant 0 : i32
    return %1, %c0_i32 : i32, i32
  }
  func.func @transform_1(%arg0: i32, %arg1: i32) -> (i32, i32) {
    %c1_i32 = arith.constant 1 : i32
    %0 = arith.muli %arg0, %c1_i32 : i32
    %1 = arith.addi %0, %arg1 : i32
    %c0_i32 = arith.constant 0 : i32
    %c0_i32_0 = arith.constant 0 : i32
    return %1, %c0_i32 : i32, i32
  }
  func.func @transform_2(%arg0: i32, %arg1: i32) -> (i32, i32, i32) {
    %c0_i32 = arith.constant 0 : i32
    %c0_i32_0 = arith.constant 0 : i32
    %c0_i32_1 = arith.constant 0 : i32
    return %arg0, %c0_i32, %c0_i32_0 : i32, i32, i32
  }
}

</mosaic_0001>

<llo_original>
// kernel: l1_loss.1
$region0: #{l1_loss.1}
  #allocation0 [shape = 'u32[]', space=smem, size = 0x4, offset = 0x4, fixed_abs, tag = 'smem constant byte address 0x4 - core index']
  #allocation1 [shape = 'u32[144,128]{1,0:T(1,128)}', space=vmem, size = 0x12000, scoped, tag = 'internal scratch']
  %s0 = inlined_call_operand.vmem [shape: f32[16,128], index: 0, kind: input, shape index: {}]
  %s1 = inlined_call_operand.vmem [shape: f32[16,128], index: 1, kind: input, shape index: {}]
  %s2 = inlined_call_operand.vmem [shape: f32[1,8,128], index: 2, kind: output, shape index: {}]
  %s3 = sld [smem:[#allocation0]]
  $region22: #{l1_loss.1} parent=0
    _
  %s5 = ssub.s32 1, %s3
  %s6 = scalar_select 0, %s5, %s3
  // Predicated region
  $region2: #{l1_loss.1} parent=0 // pred_check
    _
  $region3: #{l1_loss.1} parent=0 // pred_check_branch
    %8 = sbr.rel (0) target = $region5
  $region4: #{l1_loss.1} parent=0 // pred_region
    %s9 = sadd.s32 0, 0
    %s10 = smul.u32 2, %s9
    %p11 = scmp.lt.s32.totalorder %s10, 1
    %s12 = scalar_select %p11, %s10, 1
    %s13 = smul.addr %s12, 8
    %s14 = scalar_lea.vmem %s0, %s13
    %s15 = sadd.s32 0, 0
    %s16 = smul.u32 2, %s15
  $region5: #{l1_loss.1} parent=0 // pred_fallthru
    _
  // Predicated region
  $region6: #{l1_loss.1} parent=0 // pred_check
    _
  $region7: #{l1_loss.1} parent=0 // pred_check_branch
    %18 = sbr.rel (0) target = $region9
  $region8: #{l1_loss.1} parent=0 // pred_region
    %s19 = sadd.s32 0, 0
    %s20 = smul.u32 2, %s19
    %p21 = scmp.lt.s32.totalorder %s20, 1
    %s22 = scalar_select %p21, %s20, 1
    %s23 = smul.addr %s22, 8
    %s24 = scalar_lea.vmem %s1, %s23
    %s25 = sadd.s32 0, 0
    %s26 = smul.u32 2, %s25
  $region9: #{l1_loss.1} parent=0 // pred_fallthru
    _
  %s27 = sadd.s32 0, 0
  %s28 = smul.u32 2, %s27
  %p29 = scmp.lt.s32.totalorder %s28, 1
  %s30 = scalar_select %p29, %s28, 1
  %s31 = smul.addr %s30, 8
  %s32 = scalar_lea.vmem %s0, %s31
  %s33 = sadd.s32 0, 0
  %s34 = smul.u32 2, %s33
  %p35 = scmp.lt.s32.totalorder %s34, 1
  %s36 = scalar_select %p35, %s34, 1
  %s37 = smul.addr %s36, 8
  %s38 = scalar_lea.vmem %s1, %s37
  %s39 = sadd.s32 0, 0
  %s40 = smul.u32 2, %s39
  %p41 = scmp.lt.s32.totalorder %s40, 1
  %s42 = scalar_select %p41, %s40, 1
  %s43 = smul.addr %s42, 8
  %s44 = scalar_lea.vmem %s0, %s43
  %s45 = sadd.s32 0, 0
  %s46 = smul.u32 2, %s45
  %s47 = sadd.s32 0, 0
  %s48 = smul.u32 2, %s47
  %p49 = scmp.lt.s32.totalorder %s48, 1
  %s50 = scalar_select %p49, %s48, 1
  %s51 = smul.addr %s50, 8
  %s52 = scalar_lea.vmem %s1, %s51
  %s53 = sadd.s32 0, 0
  %s54 = smul.u32 2, %s53
  %p55 = scmp.eq.s32.totalorder 0, 0
  // Predicated region
  $region10: #{l1_loss.1} parent=0 // pred_check
    %p56 = pneg %p55
  $region11: #{l1_loss.1} parent=0 // pred_check_branch
    %58 = sbr.rel (%p56) target = $region13
  $region12: #{l1_loss.1} parent=0 // pred_region
    %59 = vst [vmem:[%s2] sm:$0xff] 0.0
  $region13: #{l1_loss.1} parent=0 // pred_fallthru
    _
  %v60 = vld [vmem:[%s44] sm:$0xff]
  %v61 = vld [vmem:[%s44 + $0x8] sm:$0xff]
  %v62 = vld [vmem:[%s52] sm:$0xff]
  %v63 = vld [vmem:[%s52 + $0x8] sm:$0xff]
  %v64 = vsub.f32 %v60, %v62
  %v65 = vsub.f32 %v61, %v63
  %v66 = vand.u32 2147483647, %v64
  %v67 = vand.u32 2147483647, %v65
  %v68 = vadd.f32 %v66, %v67
  %v69 = vld [vmem:[%s2] sm:$0xff]
  %v70 = vadd.f32 %v69, %v68
  %71 = vst [vmem:[%s2] sm:$0xff] %v70
  // Predicated region
  $region14: #{l1_loss.1} parent=0 // pred_check
    _
  $region15: #{l1_loss.1} parent=0 // pred_check_branch
    %73 = sbr.rel (0) target = $region17
  $region16: #{l1_loss.1} parent=0 // pred_region
    _
  $region17: #{l1_loss.1} parent=0 // pred_fallthru
    _
  // Predicated region
  $region18: #{l1_loss.1} parent=0 // pred_check
    _
  $region19: #{l1_loss.1} parent=0 // pred_check_branch
    %75 = sbr.rel (0) target = $region21
  $region20: #{l1_loss.1} parent=0 // pred_region
    _
  $region21: #{l1_loss.1} parent=0 // pred_fallthru
    _

</llo_original>
